<compile_context>
chip_gen: v7x
topology: tpu7x:2x2x1
jax: 0.10.0
libtpu: 0.0.40
codegen_flags: <defaults>
</compile_context>

<pallas_src>
import functools

import jax
import jax.numpy as jnp
from jax.experimental import pallas as pl
from jax.experimental.pallas import tpu as pltpu


def _round_up(v, m):
    return ((v + m - 1) // m) * m


def _tile_budget_bytes():
    """Per-buffer x-tile budget, scaled to the chip's physical VMEM."""
    try:
        vmem = pltpu.get_tpu_info().vmem_capacity_bytes
    except Exception:
        vmem = 64 << 20  # conservative fallback (v7x per-TC size)
    # v5e/v6e (128 MiB) -> 12 MiB/buffer; v7x (64 MiB) -> ~6 MiB/buffer.
    return int(min(12 << 20, max(4 << 20, vmem // 10)))


def _make_kernel(n_tiles, valid_last, inv_hw):
    """Fused global avg/max pool + shared MLP + sigmoid.

    n_tiles    : static number of spatial tiles (grid axis 1 extent)
    valid_last : static number of valid lanes in the LAST spatial tile, or
                 None if the last tile is full (no masking needed anywhere)
    inv_hw     : static 1.0 / (H*W)
    """
    last = n_tiles - 1

    def kernel(x_ref, w1_ref, w2_ref, o_ref, sum_acc, max_acc):
        # x_ref : (Nb, C, T)  spatial tile; C on sublanes, spatial on lanes
        # w1_ref: (C, Cr)     conv1.weight^T (in_ch on sublanes)
        # w2_ref: (C, Cr)     conv2.weight   (out_ch on sublanes)
        # o_ref : (Nb, C, 1)
        # sum_acc / max_acc : (Nb, C, 1) f32 running spatial sum / max
        s = pl.program_id(1)

        @pl.when(s == 0)
        def _init():
            sum_acc[...] = jnp.zeros_like(sum_acc)
            max_acc[...] = jnp.full_like(max_acc, -jnp.inf)

        xb = x_ref[...].astype(jnp.float32)  # bf16 inputs widened here

        def accumulate(x_sum, x_max):
            sum_acc[...] += jnp.sum(x_sum, axis=2, keepdims=True)
            max_acc[...] = jnp.maximum(
                max_acc[...], jnp.max(x_max, axis=2, keepdims=True))

        if valid_last is None:
            accumulate(xb, xb)
        else:
            # Ragged last tile: mask BOTH sum and max (OOB lanes are junk).
            # Mask cost is paid only on the last tile.
            @pl.when(s != last)
            def _full():
                accumulate(xb, xb)

            @pl.when(s == last)
            def _partial():
                lane = jax.lax.broadcasted_iota(jnp.int32, xb.shape, 2)
                m = lane < valid_last
                accumulate(jnp.where(m, xb, 0.0), jnp.where(m, xb, -jnp.inf))

        @pl.when(s == last)
        def _finalize():
            avg = sum_acc[...] * inv_hw            # (Nb, C, 1) adaptive avg-pool
            mx = max_acc[...]                      # (Nb, C, 1) adaptive max-pool
            w1t = w1_ref[...][None]                # (1, C, Cr)
            w2m = w2_ref[...][None]                # (1, C, Cr)
            # Layer 1 (1x1 conv, no bias) + ReLU for both branches:
            #   h[b, r] = relu( sum_c w1[r, c] * v[b, c] )   (sublane reduce)
            ha = jnp.maximum(jnp.sum(w1t * avg, axis=1, keepdims=True), 0.0)  # (Nb,1,Cr)
            hm = jnp.maximum(jnp.sum(w1t * mx, axis=1, keepdims=True), 0.0)   # (Nb,1,Cr)
            h = ha + hm                            # layer 2 is linear -> add after ReLU
            #   y[b, c] = sum_r w2[c, r] * h[b, r]           (lane reduce)
            y = jnp.sum(w2m * h, axis=2, keepdims=True)                        # (Nb,C,1)
            o_ref[...] = (1.0 / (1.0 + jnp.exp(-y))).astype(o_ref.dtype)       # sigmoid

    return kernel


def channel_attention(x, w1, w2, *, tile_bytes=None):
    """CBAM ChannelAttentionModule forward.

    x : (N, C, H, W) float32 or bfloat16
    w1: (C//ratio, C, 1, 1)  first 1x1 conv weight (no bias)
    w2: (C, C//ratio, 1, 1)  second 1x1 conv weight (no bias)
    Returns sigmoid(MLP(avgpool(x)) + MLP(maxpool(x))) of shape (N, C, 1, 1),
    in x.dtype — matches the PyTorch module.
    """
    N, C, H, W = x.shape
    Cr = w1.shape[0]
    HW = H * W
    itemsize = jnp.dtype(x.dtype).itemsize

    if tile_bytes is None:
        tile_bytes = _tile_budget_bytes()

    # Single pass over the feature map. Spatial (H*W) on the 128-lane axis,
    # channels on sublanes; the NCHW->(N,C,HW) view is free (no data movement).
    x3 = x.reshape(N, C, HW)
    per_batch_bytes = C * HW * itemsize

    if per_batch_bytes <= tile_bytes:
        # Small feature maps: fold several batch elements into one grid step.
        nb_cap = max(1, tile_bytes // per_batch_bytes)
        nb = 1
        for d in range(1, N + 1):          # largest divisor of N within the cap
            if N % d == 0 and d <= nb_cap:
                nb = d
        lane_tile = HW                     # full last dim -> no (8,128) issue
        n_tiles = 1
        valid_last = None
    else:
        nb = 1
        lane_tile = max(128, (tile_bytes // (C * itemsize)) // 128 * 128)
        lane_tile = min(lane_tile, _round_up(HW, 128))
        if lane_tile >= HW:
            lane_tile = HW
            n_tiles = 1
            valid_last = None
        else:
            n_tiles = pl.cdiv(HW, lane_tile)
            rem = HW - (n_tiles - 1) * lane_tile
            valid_last = None if rem == lane_tile else rem

    # Weight layouts used by the kernel (tiny; kept f32).
    w1_t = jnp.transpose(w1.reshape(Cr, C)).astype(jnp.float32)  # (C, Cr)
    w2_m = w2.reshape(C, Cr).astype(jnp.float32)                 # (C, Cr)

    kernel = _make_kernel(n_tiles, valid_last, float(1.0 / HW))

    # Explicit VMEM budget: double-buffered x tiles + weights + output + scratch.
    x_block_bytes = nb * C * lane_tile * itemsize
    w_bytes = 2 * C * Cr * 4
    out_block_bytes = nb * C * max(itemsize, 4)
    scratch_bytes = 2 * nb * C * 4
    needed = 2 * x_block_bytes + 2 * w_bytes + 2 * out_block_bytes + scratch_bytes
    vmem_limit = int(min(max(needed + needed // 4 + (2 << 20), 16 << 20), 48 << 20))
    vmem_limit = max(vmem_limit, needed + (1 << 20))

    out = pl.pallas_call(
        kernel,
        out_shape=jax.ShapeDtypeStruct((N, C, 1), x.dtype),
        grid=(N // nb, n_tiles),
        in_specs=[
            pl.BlockSpec((nb, C, lane_tile), lambda n, s: (n, 0, s)),
            pl.BlockSpec((C, Cr), lambda n, s: (0, 0)),
            pl.BlockSpec((C, Cr), lambda n, s: (0, 0)),
        ],
        out_specs=pl.BlockSpec((nb, C, 1), lambda n, s: (n, 0, 0)),
        scratch_shapes=[
            pltpu.VMEM((nb, C, 1), jnp.float32),  # running spatial sum
            pltpu.VMEM((nb, C, 1), jnp.float32),  # running spatial max
        ],
        compiler_params=pltpu.CompilerParams(
            dimension_semantics=("parallel", "arbitrary"),
            vmem_limit_bytes=vmem_limit),
    )(x3, w1_t, w2_m)

    return out.reshape(N, C, 1, 1)


# ----------------------------------- main ----------------------------------- #

def _reference(x, w1, w2):
    """Pure-JAX reference with PyTorch ChannelAttentionModule semantics."""
    N, C = x.shape[0], x.shape[1]
    Cr = w1.shape[0]
    xf = x.astype(jnp.float32)
    avg = jnp.mean(xf, axis=(2, 3))
    mx = jnp.max(xf, axis=(2, 3))
    w1m = w1.reshape(Cr, C).astype(jnp.float32)
    w2m = w2.reshape(C, Cr).astype(jnp.float32)

    def mlp(v):
        return jnp.maximum(v @ w1m.T, 0.0) @ w2m.T

    return jax.nn.sigmoid(mlp(avg) + mlp(mx)).reshape(N, C, 1, 1)


if __name__ == "__main__":
    key = jax.random.PRNGKey(0)
    kx, k1, k2, kx2 = jax.random.split(key, 4)

    N, C, H, W = 2, 64, 16, 16
    ratio = 16
    Cr = C // ratio  # 4

    x = jax.random.normal(kx, (N, C, H, W), jnp.float32)
    w1 = 0.1 * jax.random.normal(k1, (Cr, C, 1, 1), jnp.float32)  # conv1.weight
    w2 = 0.1 * jax.random.normal(k2, (C, Cr, 1, 1), jnp.float32)  # conv2.weight

    # 1) f32, small-map path (batch folding, single spatial tile).
    y = jax.jit(channel_attention)(x, w1, w2)
    jax.block_until_ready(y)
    assert y.shape == (N, C, 1, 1), y.shape
    ref = _reference(x, w1, w2)
    err = float(jnp.max(jnp.abs(y - ref)))
    assert err < 1e-4, err

    # 2) bf16 input path (half the HBM bytes for the single read of x).
    xb16 = x.astype(jnp.bfloat16)
    yb = jax.jit(channel_attention)(xb16, w1, w2)
    jax.block_until_ready(yb)
    refb = _reference(xb16, w1, w2)
    errb = float(jnp.max(jnp.abs(yb.astype(jnp.float32) - refb)))
    assert errb < 5e-3, errb

    # 3) Ragged multi-tile path: H*W not a multiple of 128, tiny tile budget
    #    forces several spatial tiles + in-kernel masking of the last one.
    x2 = jax.random.normal(kx2, (N, C, 18, 18), jnp.float32)
    ragged_fn = jax.jit(functools.partial(channel_attention, tile_bytes=C * 128 * 4))
    y2 = ragged_fn(x2, w1, w2)
    jax.block_until_ready(y2)
    ref2 = _reference(x2, w1, w2)
    err2 = float(jnp.max(jnp.abs(y2 - ref2)))
    assert err2 < 1e-4, err2

    print("KERNEL_OK")
</pallas_src>

<mosaic_0001>
module attributes {stable_mosaic.version = 11 : i64} {
  func.func @kernel(%arg0: i32, %arg1: i32, %arg2: memref<2x64x256xf32, #tpu.memory_space<vmem>>, %arg3: memref<64x4xf32, #tpu.memory_space<vmem>>, %arg4: memref<64x4xf32, #tpu.memory_space<vmem>>, %arg5: memref<2x64x1xf32, #tpu.memory_space<vmem>>, %arg6: memref<2x64x1xf32, #tpu.memory_space<vmem>>, %arg7: memref<2x64x1xf32, #tpu.memory_space<vmem>>) attributes {dimension_semantics = [#tpu.dimension_semantics<parallel>, #tpu.dimension_semantics<arbitrary>], iteration_bounds = array<i64: 1, 1>, scalar_prefetch = 0 : i64, scratch_operands = 2 : i64, tpu.core_type = #tpu.core_type<tc>, window_params = [{transform_indices = @transform_0, window_bounds = array<i64: 2, 64, 256>}, {pipeline_mode = #tpu.pipeline_mode<synchronous>, transform_indices = @transform_1, window_bounds = array<i64: 64, 4>}, {pipeline_mode = #tpu.pipeline_mode<synchronous>, transform_indices = @transform_2, window_bounds = array<i64: 64, 4>}, {transform_indices = @transform_3, window_bounds = array<i64: 2, 64, 1>}]} {
    %c0_i32 = arith.constant 0 : i32
    %0 = arith.cmpi eq, %arg1, %c0_i32 : i32
    %1 = arith.extui %0 : i1 to i32
    %c0_i32_0 = arith.constant 0 : i32
    %2 = arith.cmpi ne, %1, %c0_i32_0 : i32
    scf.if %2 {
      %cst_18 = arith.constant 0.000000e+00 : f32
      %17 = vector.broadcast %cst_18 : f32 to vector<2x64x1xf32>
      %c0_19 = arith.constant 0 : index
      %c0_20 = arith.constant 0 : index
      %c0_21 = arith.constant 0 : index
      %18 = vector.load %arg6[%c0_19, %c0_20, %c0_21] : memref<2x64x1xf32, #tpu.memory_space<vmem>>, vector<2x64x1xf32>
      tpu.vector_store %arg6[%c0_19, %c0_20, %c0_21], %17 {strides = array<i32>} : memref<2x64x1xf32, #tpu.memory_space<vmem>>, vector<2x64x1xf32>,
      %cst_22 = arith.constant 0xFF800000 : f32
      %19 = vector.broadcast %cst_22 : f32 to vector<2x64x1xf32>
      %c0_23 = arith.constant 0 : index
      %c0_24 = arith.constant 0 : index
      %c0_25 = arith.constant 0 : index
      %20 = vector.load %arg7[%c0_23, %c0_24, %c0_25] : memref<2x64x1xf32, #tpu.memory_space<vmem>>, vector<2x64x1xf32>
      tpu.vector_store %arg7[%c0_23, %c0_24, %c0_25], %19 {strides = array<i32>} : memref<2x64x1xf32, #tpu.memory_space<vmem>>, vector<2x64x1xf32>,
    } else {
    }
    %c0 = arith.constant 0 : index
    %c0_1 = arith.constant 0 : index
    %c0_2 = arith.constant 0 : index
    %3 = vector.load %arg2[%c0, %c0_1, %c0_2] : memref<2x64x256xf32, #tpu.memory_space<vmem>>, vector<2x64x256xf32>
    %c0_3 = arith.constant 0 : index
    %c0_4 = arith.constant 0 : index
    %c0_5 = arith.constant 0 : index
    %4 = vector.load %arg6[%c0_3, %c0_4, %c0_5] : memref<2x64x1xf32, #tpu.memory_space<vmem>>, vector<2x64x1xf32>
    %cst = arith.constant dense<0.000000e+00> : vector<2x64xf32>
    %5 = vector.multi_reduction <add>, %3, %cst [2] : vector<2x64x256xf32> to vector<2x64xf32>
    %6 = vector.shape_cast %5 : vector<2x64xf32> to vector<2x64x1xf32>
    %7 = arith.addf %4, %6 : vector<2x64x1xf32>
    %c0_6 = arith.constant 0 : index
    %c0_7 = arith.constant 0 : index
    %c0_8 = arith.constant 0 : index
    %8 = vector.load %arg6[%c0_6, %c0_7, %c0_8] : memref<2x64x1xf32, #tpu.memory_space<vmem>>, vector<2x64x1xf32>
    tpu.vector_store %arg6[%c0_6, %c0_7, %c0_8], %7 {strides = array<i32>} : memref<2x64x1xf32, #tpu.memory_space<vmem>>, vector<2x64x1xf32>,
    %c0_9 = arith.constant 0 : index
    %c0_10 = arith.constant 0 : index
    %c0_11 = arith.constant 0 : index
    %9 = vector.load %arg7[%c0_9, %c0_10, %c0_11] : memref<2x64x1xf32, #tpu.memory_space<vmem>>, vector<2x64x1xf32>
    %cst_12 = arith.constant dense<0xFF800000> : vector<2x64xf32>
    %10 = vector.multi_reduction <maximumf>, %3, %cst_12 [2] : vector<2x64x256xf32> to vector<2x64xf32>
    %11 = vector.shape_cast %10 : vector<2x64xf32> to vector<2x64x1xf32>
    %12 = arith.maximumf %9, %11 : vector<2x64x1xf32>
    %c0_13 = arith.constant 0 : index
    %c0_14 = arith.constant 0 : index
    %c0_15 = arith.constant 0 : index
    %13 = vector.load %arg7[%c0_13, %c0_14, %c0_15] : memref<2x64x1xf32, #tpu.memory_space<vmem>>, vector<2x64x1xf32>
    tpu.vector_store %arg7[%c0_13, %c0_14, %c0_15], %12 {strides = array<i32>} : memref<2x64x1xf32, #tpu.memory_space<vmem>>, vector<2x64x1xf32>,
    %c0_i32_16 = arith.constant 0 : i32
    %14 = arith.cmpi eq, %arg1, %c0_i32_16 : i32
    %15 = arith.extui %14 : i1 to i32
    %c0_i32_17 = arith.constant 0 : i32
    %16 = arith.cmpi ne, %15, %c0_i32_17 : i32
    scf.if %16 {
      %c0_18 = arith.constant 0 : index
      %c0_19 = arith.constant 0 : index
      %c0_20 = arith.constant 0 : index
      %17 = vector.load %arg6[%c0_18, %c0_19, %c0_20] : memref<2x64x1xf32, #tpu.memory_space<vmem>>, vector<2x64x1xf32>
      %cst_21 = arith.constant 3.906250e-03 : f32
      %18 = vector.broadcast %cst_21 : f32 to vector<2x64x1xf32>
      %19 = arith.mulf %17, %18 : vector<2x64x1xf32>
      %c0_22 = arith.constant 0 : index
      %c0_23 = arith.constant 0 : index
      %c0_24 = arith.constant 0 : index
      %20 = vector.load %arg7[%c0_22, %c0_23, %c0_24] : memref<2x64x1xf32, #tpu.memory_space<vmem>>, vector<2x64x1xf32>
      %c0_25 = arith.constant 0 : index
      %c0_26 = arith.constant 0 : index
      %21 = vector.load %arg3[%c0_25, %c0_26] : memref<64x4xf32, #tpu.memory_space<vmem>>, vector<64x4xf32>
      %22 = vector.shape_cast %21 : vector<64x4xf32> to vector<1x64x4xf32>
      %c0_27 = arith.constant 0 : index
      %c0_28 = arith.constant 0 : index
      %23 = vector.load %arg4[%c0_27, %c0_28] : memref<64x4xf32, #tpu.memory_space<vmem>>, vector<64x4xf32>
      %24 = vector.shape_cast %23 : vector<64x4xf32> to vector<1x64x4xf32>
      %25 = vector.broadcast %22 : vector<1x64x4xf32> to vector<2x64x4xf32>
      %26 = vector.broadcast %19 : vector<2x64x1xf32> to vector<2x64x4xf32>
      %27 = arith.mulf %25, %26 : vector<2x64x4xf32>
      %cst_29 = arith.constant dense<0.000000e+00> : vector<2x4xf32>
      %28 = vector.multi_reduction <add>, %27, %cst_29 [1] : vector<2x64x4xf32> to vector<2x4xf32>
      %29 = vector.shape_cast %28 : vector<2x4xf32> to vector<2x1x4xf32>
      %cst_30 = arith.constant 0.000000e+00 : f32
      %30 = vector.broadcast %cst_30 : f32 to vector<2x1x4xf32>
      %31 = arith.maximumf %29, %30 : vector<2x1x4xf32>
      %32 = vector.broadcast %22 : vector<1x64x4xf32> to vector<2x64x4xf32>
      %33 = vector.broadcast %20 : vector<2x64x1xf32> to vector<2x64x4xf32>
      %34 = arith.mulf %32, %33 : vector<2x64x4xf32>
      %cst_31 = arith.constant dense<0.000000e+00> : vector<2x4xf32>
      %35 = vector.multi_reduction <add>, %34, %cst_31 [1] : vector<2x64x4xf32> to vector<2x4xf32>
      %36 = vector.shape_cast %35 : vector<2x4xf32> to vector<2x1x4xf32>
      %cst_32 = arith.constant 0.000000e+00 : f32
      %37 = vector.broadcast %cst_32 : f32 to vector<2x1x4xf32>
      %38 = arith.maximumf %36, %37 : vector<2x1x4xf32>
      %39 = arith.addf %31, %38 : vector<2x1x4xf32>
      %40 = vector.broadcast %24 : vector<1x64x4xf32> to vector<2x64x4xf32>
      %41 = vector.broadcast %39 : vector<2x1x4xf32> to vector<2x64x4xf32>
      %42 = arith.mulf %40, %41 : vector<2x64x4xf32>
      %cst_33 = arith.constant dense<0.000000e+00> : vector<2x64xf32>
      %43 = vector.multi_reduction <add>, %42, %cst_33 [2] : vector<2x64x4xf32> to vector<2x64xf32>
      %44 = vector.shape_cast %43 : vector<2x64xf32> to vector<2x64x1xf32>
      %cst_34 = arith.constant 0.000000e+00 : f32
      %45 = vector.broadcast %cst_34 : f32 to vector<2x64x1xf32>
      %46 = arith.subf %45, %44 : vector<2x64x1xf32>
      %47 = math.exp %46 : vector<2x64x1xf32>
      %cst_35 = arith.constant 1.000000e+00 : f32
      %48 = vector.broadcast %cst_35 : f32 to vector<2x64x1xf32>
      %49 = arith.addf %48, %47 : vector<2x64x1xf32>
      %cst_36 = arith.constant 1.000000e+00 : f32
      %50 = vector.broadcast %cst_36 : f32 to vector<2x64x1xf32>
      %51 = arith.divf %50, %49 : vector<2x64x1xf32>
      %c0_37 = arith.constant 0 : index
      %c0_38 = arith.constant 0 : index
      %c0_39 = arith.constant 0 : index
      %52 = vector.load %arg5[%c0_37, %c0_38, %c0_39] : memref<2x64x1xf32, #tpu.memory_space<vmem>>, vector<2x64x1xf32>
      tpu.vector_store %arg5[%c0_37, %c0_38, %c0_39], %51 {strides = array<i32>} : memref<2x64x1xf32, #tpu.memory_space<vmem>>, vector<2x64x1xf32>,
    } else {
    }
    return
  }
  func.func @transform_0(%arg0: i32, %arg1: i32) -> (i32, i32, i32) {
    %c0_i32 = arith.constant 0 : i32
    %c0_i32_0 = arith.constant 0 : i32
    return %arg0, %c0_i32, %arg1 : i32, i32, i32
  }
  func.func @transform_1(%arg0: i32, %arg1: i32) -> (i32, i32) {
    %c0_i32 = arith.constant 0 : i32
    %c0_i32_0 = arith.constant 0 : i32
    %c0_i32_1 = arith.constant 0 : i32
    return %c0_i32, %c0_i32_0 : i32, i32
  }
  func.func @transform_2(%arg0: i32, %arg1: i32) -> (i32, i32) {
    %c0_i32 = arith.constant 0 : i32
    %c0_i32_0 = arith.constant 0 : i32
    %c0_i32_1 = arith.constant 0 : i32
    return %c0_i32, %c0_i32_0 : i32, i32
  }
  func.func @transform_3(%arg0: i32, %arg1: i32) -> (i32, i32, i32) {
    %c0_i32 = arith.constant 0 : i32
    %c0_i32_0 = arith.constant 0 : i32
    %c0_i32_1 = arith.constant 0 : i32
    return %arg0, %c0_i32, %c0_i32_0 : i32, i32, i32
  }
}

</mosaic_0001>

<llo_original>
// kernel: channel_attention.1
$region0: #{channel_attention.1}
  #allocation0 [shape = 'u32[]', space=smem, size = 0x4, offset = 0x4, fixed_abs, tag = 'smem constant byte address 0x4 - core index']
  #allocation1 [shape = 'u32[144,128]{1,0:T(1,128)}', space=vmem, size = 0x12000, scoped, tag = 'internal scratch']
  #allocation2 [shape = 'f32[2,64,1]{2,1,0:T(8,128)}', space=vmem, size = 0x10000, scoped, tag = 'scratch operand']
  #allocation3 [shape = 'f32[2,64,1]{2,1,0:T(8,128)}', space=vmem, size = 0x10000, scoped, tag = 'scratch operand']
  %s0 = inlined_call_operand.vmem [shape: f32[2,64,256], index: 0, kind: input, shape index: {}]
  %s1 = inlined_call_operand.vmem [shape: f32[64,4], index: 1, kind: input, shape index: {}]
  %s2 = inlined_call_operand.vmem [shape: f32[64,4], index: 2, kind: input, shape index: {}]
  %s3 = inlined_call_operand.vmem [shape: f32[2,64,1], index: 3, kind: output, shape index: {}]
  %s4 = sld [smem:[#allocation0]]
  $region30: #{channel_attention.1} parent=0
    _
  %s6 = ssub.s32 1, %s4
  %s7 = scalar_select 0, %s6, %s4
  // Predicated region
  $region2: #{channel_attention.1} parent=0 // pred_check
    _
  $region3: #{channel_attention.1} parent=0 // pred_check_branch
    %9 = sbr.rel (0) target = $region5
  $region4: #{channel_attention.1} parent=0 // pred_region
    _
  $region5: #{channel_attention.1} parent=0 // pred_fallthru
    _
  // Predicated region
  $region6: #{channel_attention.1} parent=0 // pred_check
    _
  $region7: #{channel_attention.1} parent=0 // pred_check_branch
    %11 = sbr.rel (0) target = $region9
  $region8: #{channel_attention.1} parent=0 // pred_region
    _
  $region9: #{channel_attention.1} parent=0 // pred_fallthru
    _
  // Predicated region
  $region10: #{channel_attention.1} parent=0 // pred_check
    _
  $region11: #{channel_attention.1} parent=0 // pred_check_branch
    %13 = sbr.rel (0) target = $region13
  $region12: #{channel_attention.1} parent=0 // pred_region
    _
  $region13: #{channel_attention.1} parent=0 // pred_fallthru
    _
  %p14 = scmp.eq.s32.totalorder 0, 0
  // Predicated region
  $region14: #{channel_attention.1} parent=0 // pred_check
    %p15 = pneg %p14
  $region15: #{channel_attention.1} parent=0 // pred_check_branch
    %17 = sbr.rel (%p15) target = $region17
  $region16: #{channel_attention.1} parent=0 // pred_region
    %vm18 = vcmask 7168
    %19 = vst.msk [vmem:[#allocation2] sm:$0xff] %vm18, 0.0
    %20 = vst.msk [vmem:[#allocation2 + $0x8] sm:$0xff] %vm18, 0.0
    %21 = vst.msk [vmem:[#allocation2 + $0x10] sm:$0xff] %vm18, 0.0
    %22 = vst.msk [vmem:[#allocation2 + $0x18] sm:$0xff] %vm18, 0.0
    %23 = vst.msk [vmem:[#allocation2 + $0x20] sm:$0xff] %vm18, 0.0
    %24 = vst.msk [vmem:[#allocation2 + $0x28] sm:$0xff] %vm18, 0.0
    %25 = vst.msk [vmem:[#allocation2 + $0x30] sm:$0xff] %vm18, 0.0
    %26 = vst.msk [vmem:[#allocation2 + $0x38] sm:$0xff] %vm18, 0.0
    %27 = vst.msk [vmem:[#allocation2 + $0x40] sm:$0xff] %vm18, 0.0
    %28 = vst.msk [vmem:[#allocation2 + $0x48] sm:$0xff] %vm18, 0.0
    %29 = vst.msk [vmem:[#allocation2 + $0x50] sm:$0xff] %vm18, 0.0
    %30 = vst.msk [vmem:[#allocation2 + $0x58] sm:$0xff] %vm18, 0.0
    %31 = vst.msk [vmem:[#allocation2 + $0x60] sm:$0xff] %vm18, 0.0
    %32 = vst.msk [vmem:[#allocation2 + $0x68] sm:$0xff] %vm18, 0.0
    %33 = vst.msk [vmem:[#allocation2 + $0x70] sm:$0xff] %vm18, 0.0
    %34 = vst.msk [vmem:[#allocation2 + $0x78] sm:$0xff] %vm18, 0.0
    %35 = vst.msk [vmem:[#allocation3] sm:$0xff] %vm18, -inf
    %36 = vst.msk [vmem:[#allocation3 + $0x8] sm:$0xff] %vm18, -inf
    %37 = vst.msk [vmem:[#allocation3 + $0x10] sm:$0xff] %vm18, -inf
    %38 = vst.msk [vmem:[#allocation3 + $0x18] sm:$0xff] %vm18, -inf
    %39 = vst.msk [vmem:[#allocation3 + $0x20] sm:$0xff] %vm18, -inf
    %40 = vst.msk [vmem:[#allocation3 + $0x28] sm:$0xff] %vm18, -inf
    %41 = vst.msk [vmem:[#allocation3 + $0x30] sm:$0xff] %vm18, -inf
    %42 = vst.msk [vmem:[#allocation3 + $0x38] sm:$0xff] %vm18, -inf
    %43 = vst.msk [vmem:[#allocation3 + $0x40] sm:$0xff] %vm18, -inf
    %44 = vst.msk [vmem:[#allocation3 + $0x48] sm:$0xff] %vm18, -inf
    %45 = vst.msk [vmem:[#allocation3 + $0x50] sm:$0xff] %vm18, -inf
    %46 = vst.msk [vmem:[#allocation3 + $0x58] sm:$0xff] %vm18, -inf
    %47 = vst.msk [vmem:[#allocation3 + $0x60] sm:$0xff] %vm18, -inf
    %48 = vst.msk [vmem:[#allocation3 + $0x68] sm:$0xff] %vm18, -inf
    %49 = vst.msk [vmem:[#allocation3 + $0x70] sm:$0xff] %vm18, -inf
    %50 = vst.msk [vmem:[#allocation3 + $0x78] sm:$0xff] %vm18, -inf
  $region17: #{channel_attention.1} parent=0 // pred_fallthru
    _
  %v51 = vld [vmem:[%s0] sm:$0xff]
  %v52 = vld [vmem:[%s0 + $0x8] sm:$0xff]
  %v53 = vld [vmem:[%s0 + $0x10] sm:$0xff]
  %v54 = vld [vmem:[%s0 + $0x18] sm:$0xff]
  %v55 = vld [vmem:[%s0 + $0x20] sm:$0xff]
  %v56 = vld [vmem:[%s0 + $0x28] sm:$0xff]
  %v57 = vld [vmem:[%s0 + $0x30] sm:$0xff]
  %v58 = vld [vmem:[%s0 + $0x38] sm:$0xff]
  %v59 = vld [vmem:[%s0 + $0x40] sm:$0xff]
  %v60 = vld [vmem:[%s0 + $0x48] sm:$0xff]
  %v61 = vld [vmem:[%s0 + $0x50] sm:$0xff]
  %v62 = vld [vmem:[%s0 + $0x58] sm:$0xff]
  %v63 = vld [vmem:[%s0 + $0x60] sm:$0xff]
  %v64 = vld [vmem:[%s0 + $0x68] sm:$0xff]
  %v65 = vld [vmem:[%s0 + $0x70] sm:$0xff]
  %v66 = vld [vmem:[%s0 + $0x78] sm:$0xff]
  %v67 = vld [vmem:[%s0 + $0x80] sm:$0xff]
  %v68 = vld [vmem:[%s0 + $0x88] sm:$0xff]
  %v69 = vld [vmem:[%s0 + $0x90] sm:$0xff]
  %v70 = vld [vmem:[%s0 + $0x98] sm:$0xff]
  %v71 = vld [vmem:[%s0 + $0xa0] sm:$0xff]
  %v72 = vld [vmem:[%s0 + $0xa8] sm:$0xff]
  %v73 = vld [vmem:[%s0 + $0xb0] sm:$0xff]
  %v74 = vld [vmem:[%s0 + $0xb8] sm:$0xff]
  %v75 = vld [vmem:[%s0 + $0xc0] sm:$0xff]
  %v76 = vld [vmem:[%s0 + $0xc8] sm:$0xff]
  %v77 = vld [vmem:[%s0 + $0xd0] sm:$0xff]
  %v78 = vld [vmem:[%s0 + $0xd8] sm:$0xff]
  %v79 = vld [vmem:[%s0 + $0xe0] sm:$0xff]
  %v80 = vld [vmem:[%s0 + $0xe8] sm:$0xff]
  %v81 = vld [vmem:[%s0 + $0xf0] sm:$0xff]
  %v82 = vld [vmem:[%s0 + $0xf8] sm:$0xff]
  %v83 = vld [vmem:[#allocation2] sm:$0xff]
  %v84 = vld [vmem:[#allocation2 + $0x8] sm:$0xff]
  %v85 = vld [vmem:[#allocation2 + $0x10] sm:$0xff]
  %v86 = vld [vmem:[#allocation2 + $0x18] sm:$0xff]
  %v87 = vld [vmem:[#allocation2 + $0x20] sm:$0xff]
  %v88 = vld [vmem:[#allocation2 + $0x28] sm:$0xff]
  %v89 = vld [vmem:[#allocation2 + $0x30] sm:$0xff]
  %v90 = vld [vmem:[#allocation2 + $0x38] sm:$0xff]
  %v91 = vld [vmem:[#allocation2 + $0x40] sm:$0xff]
  %v92 = vld [vmem:[#allocation2 + $0x48] sm:$0xff]
  %v93 = vld [vmem:[#allocation2 + $0x50] sm:$0xff]
  %v94 = vld [vmem:[#allocation2 + $0x58] sm:$0xff]
  %v95 = vld [vmem:[#allocation2 + $0x60] sm:$0xff]
  %v96 = vld [vmem:[#allocation2 + $0x68] sm:$0xff]
  %v97 = vld [vmem:[#allocation2 + $0x70] sm:$0xff]
  %v98 = vld [vmem:[#allocation2 + $0x78] sm:$0xff]
  %v99 = vadd.f32 %v51, %v52
  %100 = vadd.xlane.f32.xlu0 %v99
  %v101 = vpop.xlane.xlu0 %100
  %v102 = vadd.f32 %v53, %v54
  %103 = vadd.xlane.f32.xlu0 %v102
  %v104 = vpop.xlane.xlu0 %103
  %v105 = vadd.f32 %v55, %v56
  %106 = vadd.xlane.f32.xlu0 %v105
  %v107 = vpop.xlane.xlu0 %106
  %v108 = vadd.f32 %v57, %v58
  %109 = vadd.xlane.f32.xlu0 %v108
  %v110 = vpop.xlane.xlu0 %109
  %v111 = vadd.f32 %v59, %v60
  %112 = vadd.xlane.f32.xlu0 %v111
  %v113 = vpop.xlane.xlu0 %112
  %v114 = vadd.f32 %v61, %v62
  %115 = vadd.xlane.f32.xlu0 %v114
  %v116 = vpop.xlane.xlu0 %115
  %v117 = vadd.f32 %v63, %v64
  %118 = vadd.xlane.f32.xlu0 %v117
  %v119 = vpop.xlane.xlu0 %118
  %v120 = vadd.f32 %v65, %v66
  %121 = vadd.xlane.f32.xlu0 %v120
  %v122 = vpop.xlane.xlu0 %121
  %v123 = vadd.f32 %v67, %v68
  %124 = vadd.xlane.f32.xlu0 %v123
  %v125 = vpop.xlane.xlu0 %124
  %v126 = vadd.f32 %v69, %v70
  %127 = vadd.xlane.f32.xlu0 %v126
  %v128 = vpop.xlane.xlu0 %127
  %v129 = vadd.f32 %v71, %v72
  %130 = vadd.xlane.f32.xlu0 %v129
  %v131 = vpop.xlane.xlu0 %130
  %v132 = vadd.f32 %v73, %v74
  %133 = vadd.xlane.f32.xlu0 %v132
  %v134 = vpop.xlane.xlu0 %133
  %v135 = vadd.f32 %v75, %v76
  %136 = vadd.xlane.f32.xlu0 %v135
  %v137 = vpop.xlane.xlu0 %136
  %v138 = vadd.f32 %v77, %v78
  %139 = vadd.xlane.f32.xlu0 %v138
  %v140 = vpop.xlane.xlu0 %139
  %v141 = vadd.f32 %v79, %v80
  %142 = vadd.xlane.f32.xlu0 %v141
  %v143 = vpop.xlane.xlu0 %142
  %v144 = vadd.f32 %v81, %v82
  %145 = vadd.xlane.f32.xlu0 %v144
  %v146 = vpop.xlane.xlu0 %145
  %v147 = vadd.f32 %v83, %v101
  %v148 = vadd.f32 %v84, %v104
  %v149 = vadd.f32 %v85, %v107
  %v150 = vadd.f32 %v86, %v110
  %v151 = vadd.f32 %v87, %v113
  %v152 = vadd.f32 %v88, %v116
  %v153 = vadd.f32 %v89, %v119
  %v154 = vadd.f32 %v90, %v122
  %v155 = vadd.f32 %v91, %v125
  %v156 = vadd.f32 %v92, %v128
  %v157 = vadd.f32 %v93, %v131
  %v158 = vadd.f32 %v94, %v134
  %v159 = vadd.f32 %v95, %v137
  %v160 = vadd.f32 %v96, %v140
  %v161 = vadd.f32 %v97, %v143
  %v162 = vadd.f32 %v98, %v146
  %vm163 = vcmask 7168
  %164 = vst.msk [vmem:[#allocation2] sm:$0xff] %vm163, %v147
  %165 = vst.msk [vmem:[#allocation2 + $0x8] sm:$0xff] %vm163, %v148
  %166 = vst.msk [vmem:[#allocation2 + $0x10] sm:$0xff] %vm163, %v149
  %167 = vst.msk [vmem:[#allocation2 + $0x18] sm:$0xff] %vm163, %v150
  %168 = vst.msk [vmem:[#allocation2 + $0x20] sm:$0xff] %vm163, %v151
  %169 = vst.msk [vmem:[#allocation2 + $0x28] sm:$0xff] %vm163, %v152
  %170 = vst.msk [vmem:[#allocation2 + $0x30] sm:$0xff] %vm163, %v153
  %171 = vst.msk [vmem:[#allocation2 + $0x38] sm:$0xff] %vm163, %v154
  %172 = vst.msk [vmem:[#allocation2 + $0x40] sm:$0xff] %vm163, %v155
  %173 = vst.msk [vmem:[#allocation2 + $0x48] sm:$0xff] %vm163, %v156
  %174 = vst.msk [vmem:[#allocation2 + $0x50] sm:$0xff] %vm163, %v157
  %175 = vst.msk [vmem:[#allocation2 + $0x58] sm:$0xff] %vm163, %v158
  %176 = vst.msk [vmem:[#allocation2 + $0x60] sm:$0xff] %vm163, %v159
  %177 = vst.msk [vmem:[#allocation2 + $0x68] sm:$0xff] %vm163, %v160
  %178 = vst.msk [vmem:[#allocation2 + $0x70] sm:$0xff] %vm163, %v161
  %179 = vst.msk [vmem:[#allocation2 + $0x78] sm:$0xff] %vm163, %v162
  %v180 = vld [vmem:[#allocation3] sm:$0xff]
  %v181 = vld [vmem:[#allocation3 + $0x8] sm:$0xff]
  %v182 = vld [vmem:[#allocation3 + $0x10] sm:$0xff]
  %v183 = vld [vmem:[#allocation3 + $0x18] sm:$0xff]
  %v184 = vld [vmem:[#allocation3 + $0x20] sm:$0xff]
  %v185 = vld [vmem:[#allocation3 + $0x28] sm:$0xff]
  %v186 = vld [vmem:[#allocation3 + $0x30] sm:$0xff]
  %v187 = vld [vmem:[#allocation3 + $0x38] sm:$0xff]
  %v188 = vld [vmem:[#allocation3 + $0x40] sm:$0xff]
  %v189 = vld [vmem:[#allocation3 + $0x48] sm:$0xff]
  %v190 = vld [vmem:[#allocation3 + $0x50] sm:$0xff]
  %v191 = vld [vmem:[#allocation3 + $0x58] sm:$0xff]
  %v192 = vld [vmem:[#allocation3 + $0x60] sm:$0xff]
  %v193 = vld [vmem:[#allocation3 + $0x68] sm:$0xff]
  %v194 = vld [vmem:[#allocation3 + $0x70] sm:$0xff]
  %v195 = vld [vmem:[#allocation3 + $0x78] sm:$0xff]
  %v196 = vmax.f32 %v51, %v52
  %197 = vmax.xlane.f32.xlu0 %v196
  %v198 = vpop.xlane.xlu0 %197
  %v199 = vmax.f32 %v53, %v54
  %200 = vmax.xlane.f32.xlu0 %v199
  %v201 = vpop.xlane.xlu0 %200
  %v202 = vmax.f32 %v55, %v56
  %203 = vmax.xlane.f32.xlu0 %v202
  %v204 = vpop.xlane.xlu0 %203
  %v205 = vmax.f32 %v57, %v58
  %206 = vmax.xlane.f32.xlu0 %v205
  %v207 = vpop.xlane.xlu0 %206
  %v208 = vmax.f32 %v59, %v60
  %209 = vmax.xlane.f32.xlu0 %v208
  %v210 = vpop.xlane.xlu0 %209
  %v211 = vmax.f32 %v61, %v62
  %212 = vmax.xlane.f32.xlu0 %v211
  %v213 = vpop.xlane.xlu0 %212
  %v214 = vmax.f32 %v63, %v64
  %215 = vmax.xlane.f32.xlu0 %v214
  %v216 = vpop.xlane.xlu0 %215
  %v217 = vmax.f32 %v65, %v66
  %218 = vmax.xlane.f32.xlu0 %v217
  %v219 = vpop.xlane.xlu0 %218
  %v220 = vmax.f32 %v67, %v68
  %221 = vmax.xlane.f32.xlu0 %v220
  %v222 = vpop.xlane.xlu0 %221
  %v223 = vmax.f32 %v69, %v70
  %224 = vmax.xlane.f32.xlu0 %v223
  %v225 = vpop.xlane.xlu0 %224
  %v226 = vmax.f32 %v71, %v72
  %227 = vmax.xlane.f32.xlu0 %v226
  %v228 = vpop.xlane.xlu0 %227
  %v229 = vmax.f32 %v73, %v74
  %230 = vmax.xlane.f32.xlu0 %v229
  %v231 = vpop.xlane.xlu0 %230
  %v232 = vmax.f32 %v75, %v76
  %233 = vmax.xlane.f32.xlu0 %v232
  %v234 = vpop.xlane.xlu0 %233
  %v235 = vmax.f32 %v77, %v78
  %236 = vmax.xlane.f32.xlu0 %v235
  %v237 = vpop.xlane.xlu0 %236
  %v238 = vmax.f32 %v79, %v80
  %239 = vmax.xlane.f32.xlu0 %v238
  %v240 = vpop.xlane.xlu0 %239
  %v241 = vmax.f32 %v81, %v82
  %242 = vmax.xlane.f32.xlu0 %v241
  %v243 = vpop.xlane.xlu0 %242
  %v244 = vmax.f32 %v180, %v198
  %v245 = vmax.f32 %v181, %v201
  %v246 = vmax.f32 %v182, %v204
  %v247 = vmax.f32 %v183, %v207
  %v248 = vmax.f32 %v184, %v210
  %v249 = vmax.f32 %v185, %v213
  %v250 = vmax.f32 %v186, %v216
  %v251 = vmax.f32 %v187, %v219
  %v252 = vmax.f32 %v188, %v222
  %v253 = vmax.f32 %v189, %v225
  %v254 = vmax.f32 %v190, %v228
  %v255 = vmax.f32 %v191, %v231
  %v256 = vmax.f32 %v192, %v234
  %v257 = vmax.f32 %v193, %v237
  %v258 = vmax.f32 %v194, %v240
  %v259 = vmax.f32 %v195, %v243
  %260 = vst.msk [vmem:[#allocation3] sm:$0xff] %vm163, %v244
  %261 = vst.msk [vmem:[#allocation3 + $0x8] sm:$0xff] %vm163, %v245
  %262 = vst.msk [vmem:[#allocation3 + $0x10] sm:$0xff] %vm163, %v246
  %263 = vst.msk [vmem:[#allocation3 + $0x18] sm:$0xff] %vm163, %v247
  %264 = vst.msk [vmem:[#allocation3 + $0x20] sm:$0xff] %vm163, %v248
  %265 = vst.msk [vmem:[#allocation3 + $0x28] sm:$0xff] %vm163, %v249
  %266 = vst.msk [vmem:[#allocation3 + $0x30] sm:$0xff] %vm163, %v250
  %267 = vst.msk [vmem:[#allocation3 + $0x38] sm:$0xff] %vm163, %v251
  %268 = vst.msk [vmem:[#allocation3 + $0x40] sm:$0xff] %vm163, %v252
  %269 = vst.msk [vmem:[#allocation3 + $0x48] sm:$0xff] %vm163, %v253
  %270 = vst.msk [vmem:[#allocation3 + $0x50] sm:$0xff] %vm163, %v254
  %271 = vst.msk [vmem:[#allocation3 + $0x58] sm:$0xff] %vm163, %v255
  %272 = vst.msk [vmem:[#allocation3 + $0x60] sm:$0xff] %vm163, %v256
  %273 = vst.msk [vmem:[#allocation3 + $0x68] sm:$0xff] %vm163, %v257
  %274 = vst.msk [vmem:[#allocation3 + $0x70] sm:$0xff] %vm163, %v258
  %275 = vst.msk [vmem:[#allocation3 + $0x78] sm:$0xff] %vm163, %v259
  // Predicated region
  $region18: #{channel_attention.1} parent=0 // pred_check
    %p276 = pneg %p14
  $region19: #{channel_attention.1} parent=0 // pred_check_branch
    %278 = sbr.rel (%p276) target = $region21
  $region20: #{channel_attention.1} parent=0 // pred_region
    %v279 = vld [vmem:[#allocation2] sm:$0xff]
    %v280 = vld [vmem:[#allocation2 + $0x8] sm:$0xff]
    %v281 = vld [vmem:[#allocation2 + $0x10] sm:$0xff]
    %v282 = vld [vmem:[#allocation2 + $0x18] sm:$0xff]
    %v283 = vld [vmem:[#allocation2 + $0x20] sm:$0xff]
    %v284 = vld [vmem:[#allocation2 + $0x28] sm:$0xff]
    %v285 = vld [vmem:[#allocation2 + $0x30] sm:$0xff]
    %v286 = vld [vmem:[#allocation2 + $0x38] sm:$0xff]
    %v287 = vld [vmem:[#allocation2 + $0x40] sm:$0xff]
    %v288 = vld [vmem:[#allocation2 + $0x48] sm:$0xff]
    %v289 = vld [vmem:[#allocation2 + $0x50] sm:$0xff]
    %v290 = vld [vmem:[#allocation2 + $0x58] sm:$0xff]
    %v291 = vld [vmem:[#allocation2 + $0x60] sm:$0xff]
    %v292 = vld [vmem:[#allocation2 + $0x68] sm:$0xff]
    %v293 = vld [vmem:[#allocation2 + $0x70] sm:$0xff]
    %v294 = vld [vmem:[#allocation2 + $0x78] sm:$0xff]
    %v295 = vmul.f32 %v279, 0.00390625
    %v296 = vmul.f32 %v280, 0.00390625
    %v297 = vmul.f32 %v281, 0.00390625
    %v298 = vmul.f32 %v282, 0.00390625
    %v299 = vmul.f32 %v283, 0.00390625
    %v300 = vmul.f32 %v284, 0.00390625
    %v301 = vmul.f32 %v285, 0.00390625
    %v302 = vmul.f32 %v286, 0.00390625
    %v303 = vmul.f32 %v287, 0.00390625
    %v304 = vmul.f32 %v288, 0.00390625
    %v305 = vmul.f32 %v289, 0.00390625
    %v306 = vmul.f32 %v290, 0.00390625
    %v307 = vmul.f32 %v291, 0.00390625
    %v308 = vmul.f32 %v292, 0.00390625
    %v309 = vmul.f32 %v293, 0.00390625
    %v310 = vmul.f32 %v294, 0.00390625
    %v311 = vld [vmem:[#allocation3] sm:$0xff]
    %v312 = vld [vmem:[#allocation3 + $0x8] sm:$0xff]
    %v313 = vld [vmem:[#allocation3 + $0x10] sm:$0xff]
    %v314 = vld [vmem:[#allocation3 + $0x18] sm:$0xff]
    %v315 = vld [vmem:[#allocation3 + $0x20] sm:$0xff]
    %v316 = vld [vmem:[#allocation3 + $0x28] sm:$0xff]
    %v317 = vld [vmem:[#allocation3 + $0x30] sm:$0xff]
    %v318 = vld [vmem:[#allocation3 + $0x38] sm:$0xff]
    %v319 = vld [vmem:[#allocation3 + $0x40] sm:$0xff]
    %v320 = vld [vmem:[#allocation3 + $0x48] sm:$0xff]
    %v321 = vld [vmem:[#allocation3 + $0x50] sm:$0xff]
    %v322 = vld [vmem:[#allocation3 + $0x58] sm:$0xff]
    %v323 = vld [vmem:[#allocation3 + $0x60] sm:$0xff]
    %v324 = vld [vmem:[#allocation3 + $0x68] sm:$0xff]
    %v325 = vld [vmem:[#allocation3 + $0x70] sm:$0xff]
    %v326 = vld [vmem:[#allocation3 + $0x78] sm:$0xff]
    %v327 = vld [vmem:[%s1] sm:$0xff]
    %v328 = vld [vmem:[%s1 + $0x8] sm:$0xff]
    %v329 = vld [vmem:[%s1 + $0x10] sm:$0xff]
    %v330 = vld [vmem:[%s1 + $0x18] sm:$0xff]
    %v331 = vld [vmem:[%s1 + $0x20] sm:$0xff]
    %v332 = vld [vmem:[%s1 + $0x28] sm:$0xff]
    %v333 = vld [vmem:[%s1 + $0x30] sm:$0xff]
    %v334 = vld [vmem:[%s1 + $0x38] sm:$0xff]
    %v335 = vld [vmem:[%s2] sm:$0xff]
    %v336 = vld [vmem:[%s2 + $0x8] sm:$0xff]
    %v337 = vld [vmem:[%s2 + $0x10] sm:$0xff]
    %v338 = vld [vmem:[%s2 + $0x18] sm:$0xff]
    %v339 = vld [vmem:[%s2 + $0x20] sm:$0xff]
    %v340 = vld [vmem:[%s2 + $0x28] sm:$0xff]
    %v341 = vld [vmem:[%s2 + $0x30] sm:$0xff]
    %v342 = vld [vmem:[%s2 + $0x38] sm:$0xff]
    %344 = vset.pattern.permute.xlu0 0
    %345 = vperm.xlu0 %344, %v295
    %v346 = vpop.permute.xlu0 %345
    %349 = vset.pattern.permute.xlu0 0
    %350 = vperm.xlu0 %349, %v296
    %v351 = vpop.permute.xlu0 %350
    %354 = vset.pattern.permute.xlu0 0
    %355 = vperm.xlu0 %354, %v297
    %v356 = vpop.permute.xlu0 %355
    %359 = vset.pattern.permute.xlu0 0
    %360 = vperm.xlu0 %359, %v298
    %v361 = vpop.permute.xlu0 %360
    %364 = vset.pattern.permute.xlu0 0
    %365 = vperm.xlu0 %364, %v299
    %v366 = vpop.permute.xlu0 %365
    %369 = vset.pattern.permute.xlu0 0
    %370 = vperm.xlu0 %369, %v300
    %v371 = vpop.permute.xlu0 %370
    %374 = vset.pattern.permute.xlu0 0
    %375 = vperm.xlu0 %374, %v301
    %v376 = vpop.permute.xlu0 %375
    %379 = vset.pattern.permute.xlu0 0
    %380 = vperm.xlu0 %379, %v302
    %v381 = vpop.permute.xlu0 %380
    %384 = vset.pattern.permute.xlu0 0
    %385 = vperm.xlu0 %384, %v303
    %v386 = vpop.permute.xlu0 %385
    %389 = vset.pattern.permute.xlu0 0
    %390 = vperm.xlu0 %389, %v304
    %v391 = vpop.permute.xlu0 %390
    %394 = vset.pattern.permute.xlu0 0
    %395 = vperm.xlu0 %394, %v305
    %v396 = vpop.permute.xlu0 %395
    %399 = vset.pattern.permute.xlu0 0
    %400 = vperm.xlu0 %399, %v306
    %v401 = vpop.permute.xlu0 %400
    %404 = vset.pattern.permute.xlu0 0
    %405 = vperm.xlu0 %404, %v307
    %v406 = vpop.permute.xlu0 %405
    %409 = vset.pattern.permute.xlu0 0
    %410 = vperm.xlu0 %409, %v308
    %v411 = vpop.permute.xlu0 %410
    %414 = vset.pattern.permute.xlu0 0
    %415 = vperm.xlu0 %414, %v309
    %v416 = vpop.permute.xlu0 %415
    %419 = vset.pattern.permute.xlu0 0
    %420 = vperm.xlu0 %419, %v310
    %v421 = vpop.permute.xlu0 %420
    %v423 = vmul.f32 %v327, %v346
    %v424 = vmul.f32 %v328, %v351
    %v425 = vmul.f32 %v329, %v356
    %v426 = vmul.f32 %v330, %v361
    %v427 = vmul.f32 %v331, %v366
    %v428 = vmul.f32 %v332, %v371
    %v429 = vmul.f32 %v333, %v376
    %v430 = vmul.f32 %v334, %v381
    %v431 = vmul.f32 %v327, %v386
    %v432 = vmul.f32 %v328, %v391
    %v433 = vmul.f32 %v329, %v396
    %v434 = vmul.f32 %v330, %v401
    %v435 = vmul.f32 %v331, %v406
    %v436 = vmul.f32 %v332, %v411
    %v437 = vmul.f32 %v333, %v416
    %v438 = vmul.f32 %v334, %v421
    %vm439 = vcmask 31744
    %v440 = vsel %vm439, %v423, 0.0
    %v441 = vsel %vm439, %v424, 0.0
    %v442 = vadd.f32 %v440, %v441
    %v443 = vsel %vm439, %v425, 0.0
    %v444 = vadd.f32 %v442, %v443
    %v445 = vsel %vm439, %v426, 0.0
    %v446 = vadd.f32 %v444, %v445
    %v447 = vsel %vm439, %v427, 0.0
    %v448 = vadd.f32 %v446, %v447
    %v449 = vsel %vm439, %v428, 0.0
    %v450 = vadd.f32 %v448, %v449
    %v451 = vsel %vm439, %v429, 0.0
    %v452 = vadd.f32 %v450, %v451
    %v453 = vsel %vm439, %v430, 0.0
    %v454 = vadd.f32 %v452, %v453
    %v455 = vrot.slane %v454, 4
    %v456 = vadd.f32 %v454, %v455
    %v457 = vrot.slane %v456, 2
    %v458 = vadd.f32 %v456, %v457
    %v459 = vrot.slane %v458, 1
    %v460 = vadd.f32 %v458, %v459
    %v461 = vsel %vm439, %v431, 0.0
    %v462 = vsel %vm439, %v432, 0.0
    %v463 = vadd.f32 %v461, %v462
    %v464 = vsel %vm439, %v433, 0.0
    %v465 = vadd.f32 %v463, %v464
    %v466 = vsel %vm439, %v434, 0.0
    %v467 = vadd.f32 %v465, %v466
    %v468 = vsel %vm439, %v435, 0.0
    %v469 = vadd.f32 %v467, %v468
    %v470 = vsel %vm439, %v436, 0.0
    %v471 = vadd.f32 %v469, %v470
    %v472 = vsel %vm439, %v437, 0.0
    %v473 = vadd.f32 %v471, %v472
    %v474 = vsel %vm439, %v438, 0.0
    %v475 = vadd.f32 %v473, %v474
    %v476 = vrot.slane %v475, 4
    %v477 = vadd.f32 %v475, %v476
    %v478 = vrot.slane %v477, 2
    %v479 = vadd.f32 %v477, %v478
    %v480 = vrot.slane %v479, 1
    %v481 = vadd.f32 %v479, %v480
    %v482 = vmax.f32 %v460, 0.0
    %v483 = vmax.f32 %v481, 0.0
    %485 = vset.pattern.permute.xlu0 0
    %486 = vperm.xlu0 %485, %v311
    %v487 = vpop.permute.xlu0 %486
    %490 = vset.pattern.permute.xlu0 0
    %491 = vperm.xlu0 %490, %v312
    %v492 = vpop.permute.xlu0 %491
    %495 = vset.pattern.permute.xlu0 0
    %496 = vperm.xlu0 %495, %v313
    %v497 = vpop.permute.xlu0 %496
    %500 = vset.pattern.permute.xlu0 0
    %501 = vperm.xlu0 %500, %v314
    %v502 = vpop.permute.xlu0 %501
    %505 = vset.pattern.permute.xlu0 0
    %506 = vperm.xlu0 %505, %v315
    %v507 = vpop.permute.xlu0 %506
    %510 = vset.pattern.permute.xlu0 0
    %511 = vperm.xlu0 %510, %v316
    %v512 = vpop.permute.xlu0 %511
    %515 = vset.pattern.permute.xlu0 0
    %516 = vperm.xlu0 %515, %v317
    %v517 = vpop.permute.xlu0 %516
    %520 = vset.pattern.permute.xlu0 0
    %521 = vperm.xlu0 %520, %v318
    %v522 = vpop.permute.xlu0 %521
    %525 = vset.pattern.permute.xlu0 0
    %526 = vperm.xlu0 %525, %v319
    %v527 = vpop.permute.xlu0 %526
    %530 = vset.pattern.permute.xlu0 0
    %531 = vperm.xlu0 %530, %v320
    %v532 = vpop.permute.xlu0 %531
    %535 = vset.pattern.permute.xlu0 0
    %536 = vperm.xlu0 %535, %v321
    %v537 = vpop.permute.xlu0 %536
    %540 = vset.pattern.permute.xlu0 0
    %541 = vperm.xlu0 %540, %v322
    %v542 = vpop.permute.xlu0 %541
    %545 = vset.pattern.permute.xlu0 0
    %546 = vperm.xlu0 %545, %v323
    %v547 = vpop.permute.xlu0 %546
    %550 = vset.pattern.permute.xlu0 0
    %551 = vperm.xlu0 %550, %v324
    %v552 = vpop.permute.xlu0 %551
    %555 = vset.pattern.permute.xlu0 0
    %556 = vperm.xlu0 %555, %v325
    %v557 = vpop.permute.xlu0 %556
    %560 = vset.pattern.permute.xlu0 0
    %561 = vperm.xlu0 %560, %v326
    %v562 = vpop.permute.xlu0 %561
    %v564 = vmul.f32 %v327, %v487
    %v565 = vmul.f32 %v328, %v492
    %v566 = vmul.f32 %v329, %v497
    %v567 = vmul.f32 %v330, %v502
    %v568 = vmul.f32 %v331, %v507
    %v569 = vmul.f32 %v332, %v512
    %v570 = vmul.f32 %v333, %v517
    %v571 = vmul.f32 %v334, %v522
    %v572 = vmul.f32 %v327, %v527
    %v573 = vmul.f32 %v328, %v532
    %v574 = vmul.f32 %v329, %v537
    %v575 = vmul.f32 %v330, %v542
    %v576 = vmul.f32 %v331, %v547
    %v577 = vmul.f32 %v332, %v552
    %v578 = vmul.f32 %v333, %v557
    %v579 = vmul.f32 %v334, %v562
    %v580 = vsel %vm439, %v564, 0.0
    %v581 = vsel %vm439, %v565, 0.0
    %v582 = vadd.f32 %v580, %v581
    %v583 = vsel %vm439, %v566, 0.0
    %v584 = vadd.f32 %v582, %v583
    %v585 = vsel %vm439, %v567, 0.0
    %v586 = vadd.f32 %v584, %v585
    %v587 = vsel %vm439, %v568, 0.0
    %v588 = vadd.f32 %v586, %v587
    %v589 = vsel %vm439, %v569, 0.0
    %v590 = vadd.f32 %v588, %v589
    %v591 = vsel %vm439, %v570, 0.0
    %v592 = vadd.f32 %v590, %v591
    %v593 = vsel %vm439, %v571, 0.0
    %v594 = vadd.f32 %v592, %v593
    %v595 = vrot.slane %v594, 4
    %v596 = vadd.f32 %v594, %v595
    %v597 = vrot.slane %v596, 2
    %v598 = vadd.f32 %v596, %v597
    %v599 = vrot.slane %v598, 1
    %v600 = vadd.f32 %v598, %v599
    %v601 = vsel %vm439, %v572, 0.0
    %v602 = vsel %vm439, %v573, 0.0
    %v603 = vadd.f32 %v601, %v602
    %v604 = vsel %vm439, %v574, 0.0
    %v605 = vadd.f32 %v603, %v604
    %v606 = vsel %vm439, %v575, 0.0
    %v607 = vadd.f32 %v605, %v606
    %v608 = vsel %vm439, %v576, 0.0
    %v609 = vadd.f32 %v607, %v608
    %v610 = vsel %vm439, %v577, 0.0
    %v611 = vadd.f32 %v609, %v610
    %v612 = vsel %vm439, %v578, 0.0
    %v613 = vadd.f32 %v611, %v612
    %v614 = vsel %vm439, %v579, 0.0
    %v615 = vadd.f32 %v613, %v614
    %v616 = vrot.slane %v615, 4
    %v617 = vadd.f32 %v615, %v616
    %v618 = vrot.slane %v617, 2
    %v619 = vadd.f32 %v617, %v618
    %v620 = vrot.slane %v619, 1
    %v621 = vadd.f32 %v619, %v620
    %v622 = vmax.f32 %v600, 0.0
    %v623 = vmax.f32 %v621, 0.0
    %v624 = vadd.f32 %v482, %v622
    %v625 = vadd.f32 %v483, %v623
    %v626 = vmul.f32 %v335, %v624
    %v627 = vmul.f32 %v336, %v624
    %v628 = vmul.f32 %v337, %v624
    %v629 = vmul.f32 %v338, %v624
    %v630 = vmul.f32 %v339, %v624
    %v631 = vmul.f32 %v340, %v624
    %v632 = vmul.f32 %v341, %v624
    %v633 = vmul.f32 %v342, %v624
    %v634 = vmul.f32 %v335, %v625
    %v635 = vmul.f32 %v336, %v625
    %v636 = vmul.f32 %v337, %v625
    %v637 = vmul.f32 %v338, %v625
    %v638 = vmul.f32 %v339, %v625
    %v639 = vmul.f32 %v340, %v625
    %v640 = vmul.f32 %v341, %v625
    %v641 = vmul.f32 %v342, %v625
    %v642 = vsel %vm439, %v626, 0.0
    %643 = vadd.xlane.f32.xlu0 %v642
    %v644 = vpop.xlane.xlu0 %643
    %v645 = vsel %vm439, %v627, 0.0
    %646 = vadd.xlane.f32.xlu0 %v645
    %v647 = vpop.xlane.xlu0 %646
    %v648 = vsel %vm439, %v628, 0.0
    %649 = vadd.xlane.f32.xlu0 %v648
    %v650 = vpop.xlane.xlu0 %649
    %v651 = vsel %vm439, %v629, 0.0
    %652 = vadd.xlane.f32.xlu0 %v651
    %v653 = vpop.xlane.xlu0 %652
    %v654 = vsel %vm439, %v630, 0.0
    %655 = vadd.xlane.f32.xlu0 %v654
    %v656 = vpop.xlane.xlu0 %655
    %v657 = vsel %vm439, %v631, 0.0
    %658 = vadd.xlane.f32.xlu0 %v657
    %v659 = vpop.xlane.xlu0 %658
    %v660 = vsel %vm439, %v632, 0.0
    %661 = vadd.xlane.f32.xlu0 %v660
    %v662 = vpop.xlane.xlu0 %661
    %v663 = vsel %vm439, %v633, 0.0
    %664 = vadd.xlane.f32.xlu0 %v663
    %v665 = vpop.xlane.xlu0 %664
    %v666 = vsel %vm439, %v634, 0.0
    %667 = vadd.xlane.f32.xlu0 %v666
    %v668 = vpop.xlane.xlu0 %667
    %v669 = vsel %vm439, %v635, 0.0
    %670 = vadd.xlane.f32.xlu0 %v669
    %v671 = vpop.xlane.xlu0 %670
    %v672 = vsel %vm439, %v636, 0.0
    %673 = vadd.xlane.f32.xlu0 %v672
    %v674 = vpop.xlane.xlu0 %673
    %v675 = vsel %vm439, %v637, 0.0
    %676 = vadd.xlane.f32.xlu0 %v675
    %v677 = vpop.xlane.xlu0 %676
    %v678 = vsel %vm439, %v638, 0.0
    %679 = vadd.xlane.f32.xlu0 %v678
    %v680 = vpop.xlane.xlu0 %679
    %v681 = vsel %vm439, %v639, 0.0
    %682 = vadd.xlane.f32.xlu0 %v681
    %v683 = vpop.xlane.xlu0 %682
    %v684 = vsel %vm439, %v640, 0.0
    %685 = vadd.xlane.f32.xlu0 %v684
    %v686 = vpop.xlane.xlu0 %685
    %v687 = vsel %vm439, %v641, 0.0
    %688 = vadd.xlane.f32.xlu0 %v687
    %v689 = vpop.xlane.xlu0 %688
    %v690 = vsub.f32 0.0, %v644
    %v691 = vsub.f32 0.0, %v647
    %v692 = vsub.f32 0.0, %v650
    %v693 = vsub.f32 0.0, %v653
    %v694 = vsub.f32 0.0, %v656
    %v695 = vsub.f32 0.0, %v659
    %v696 = vsub.f32 0.0, %v662
    %v697 = vsub.f32 0.0, %v665
    %v698 = vsub.f32 0.0, %v668
    %v699 = vsub.f32 0.0, %v671
    %v700 = vsub.f32 0.0, %v674
    %v701 = vsub.f32 0.0, %v677
    %v702 = vsub.f32 0.0, %v680
    %v703 = vsub.f32 0.0, %v683
    %v704 = vsub.f32 0.0, %v686
    %v705 = vsub.f32 0.0, %v689
    %v706 = vmul.f32 %v690, 1.442695
    %v707 = vpow.pop %v706
    %v708 = vmul.f32 %v691, 1.442695
    %v709 = vpow.pop %v708
    %v710 = vmul.f32 %v692, 1.442695
    %v711 = vpow.pop %v710
    %v712 = vmul.f32 %v693, 1.442695
    %v713 = vpow.pop %v712
    %v714 = vmul.f32 %v694, 1.442695
    %v715 = vpow.pop %v714
    %v716 = vmul.f32 %v695, 1.442695
    %v717 = vpow.pop %v716
    %v718 = vmul.f32 %v696, 1.442695
    %v719 = vpow.pop %v718
    %v720 = vmul.f32 %v697, 1.442695
    %v721 = vpow.pop %v720
    %v722 = vmul.f32 %v698, 1.442695
    %v723 = vpow.pop %v722
    %v724 = vmul.f32 %v699, 1.442695
    %v725 = vpow.pop %v724
    %v726 = vmul.f32 %v700, 1.442695
    %v727 = vpow.pop %v726
    %v728 = vmul.f32 %v701, 1.442695
    %v729 = vpow.pop %v728
    %v730 = vmul.f32 %v702, 1.442695
    %v731 = vpow.pop %v730
    %v732 = vmul.f32 %v703, 1.442695
    %v733 = vpow.pop %v732
    %v734 = vmul.f32 %v704, 1.442695
    %v735 = vpow.pop %v734
    %v736 = vmul.f32 %v705, 1.442695
    %v737 = vpow.pop %v736
    %v738 = vadd.f32 %v707, 1.0
    %v739 = vadd.f32 %v709, 1.0
    %v740 = vadd.f32 %v711, 1.0
    %v741 = vadd.f32 %v713, 1.0
    %v742 = vadd.f32 %v715, 1.0
    %v743 = vadd.f32 %v717, 1.0
    %v744 = vadd.f32 %v719, 1.0
    %v745 = vadd.f32 %v721, 1.0
    %v746 = vadd.f32 %v723, 1.0
    %v747 = vadd.f32 %v725, 1.0
    %v748 = vadd.f32 %v727, 1.0
    %v749 = vadd.f32 %v729, 1.0
    %v750 = vadd.f32 %v731, 1.0
    %v751 = vadd.f32 %v733, 1.0
    %v752 = vadd.f32 %v735, 1.0
    %v753 = vadd.f32 %v737, 1.0
    %v754 = vrcp.pop %v738
    %v755 = vmul.f32 1.0, %v754
    %v756 = vrcp.pop %v739
    %v757 = vmul.f32 1.0, %v756
    %v758 = vrcp.pop %v740
    %v759 = vmul.f32 1.0, %v758
    %v760 = vrcp.pop %v741
    %v761 = vmul.f32 1.0, %v760
    %v762 = vrcp.pop %v742
    %v763 = vmul.f32 1.0, %v762
    %v764 = vrcp.pop %v743
    %v765 = vmul.f32 1.0, %v764
    %v766 = vrcp.pop %v744
    %v767 = vmul.f32 1.0, %v766
    %v768 = vrcp.pop %v745
    %v769 = vmul.f32 1.0, %v768
    %v770 = vrcp.pop %v746
    %v771 = vmul.f32 1.0, %v770
    %v772 = vrcp.pop %v747
    %v773 = vmul.f32 1.0, %v772
    %v774 = vrcp.pop %v748
    %v775 = vmul.f32 1.0, %v774
    %v776 = vrcp.pop %v749
    %v777 = vmul.f32 1.0, %v776
    %v778 = vrcp.pop %v750
    %v779 = vmul.f32 1.0, %v778
    %v780 = vrcp.pop %v751
    %v781 = vmul.f32 1.0, %v780
    %v782 = vrcp.pop %v752
    %v783 = vmul.f32 1.0, %v782
    %v784 = vrcp.pop %v753
    %v785 = vmul.f32 1.0, %v784
    %786 = vst.msk [vmem:[%s3] sm:$0xff] %vm163, %v755
    %787 = vst.msk [vmem:[%s3 + $0x8] sm:$0xff] %vm163, %v757
    %788 = vst.msk [vmem:[%s3 + $0x10] sm:$0xff] %vm163, %v759
    %789 = vst.msk [vmem:[%s3 + $0x18] sm:$0xff] %vm163, %v761
    %790 = vst.msk [vmem:[%s3 + $0x20] sm:$0xff] %vm163, %v763
    %791 = vst.msk [vmem:[%s3 + $0x28] sm:$0xff] %vm163, %v765
    %792 = vst.msk [vmem:[%s3 + $0x30] sm:$0xff] %vm163, %v767
    %793 = vst.msk [vmem:[%s3 + $0x38] sm:$0xff] %vm163, %v769
    %794 = vst.msk [vmem:[%s3 + $0x40] sm:$0xff] %vm163, %v771
    %795 = vst.msk [vmem:[%s3 + $0x48] sm:$0xff] %vm163, %v773
    %796 = vst.msk [vmem:[%s3 + $0x50] sm:$0xff] %vm163, %v775
    %797 = vst.msk [vmem:[%s3 + $0x58] sm:$0xff] %vm163, %v777
    %798 = vst.msk [vmem:[%s3 + $0x60] sm:$0xff] %vm163, %v779
    %799 = vst.msk [vmem:[%s3 + $0x68] sm:$0xff] %vm163, %v781
    %800 = vst.msk [vmem:[%s3 + $0x70] sm:$0xff] %vm163, %v783
    %801 = vst.msk [vmem:[%s3 + $0x78] sm:$0xff] %vm163, %v785
  $region21: #{channel_attention.1} parent=0 // pred_fallthru
    _
  // Predicated region
  $region22: #{channel_attention.1} parent=0 // pred_check
    _
  $region23: #{channel_attention.1} parent=0 // pred_check_branch
    %803 = sbr.rel (0) target = $region25
  $region24: #{channel_attention.1} parent=0 // pred_region
    _
  $region25: #{channel_attention.1} parent=0 // pred_fallthru
    _
  // Predicated region
  $region26: #{channel_attention.1} parent=0 // pred_check
    _
  $region27: #{channel_attention.1} parent=0 // pred_check_branch
    %805 = sbr.rel (0) target = $region29
  $region28: #{channel_attention.1} parent=0 // pred_region
    _
  $region29: #{channel_attention.1} parent=0 // pred_fallthru
    _

</llo_original>
